<compile_context>
chip_gen: v6e
topology: v6e:2x2x1
jax: 0.10.0
libtpu: 0.0.40
codegen_flags: <defaults>
</compile_context>

<pallas_src>
import jax
import jax.numpy as jnp
from jax.experimental import pallas as pl
from jax.experimental.pallas import tpu as pltpu

# ---------------- model sizes (consistent with the module) ------------------
INPUT_DIM = 32          # size of the hidden-state vector fed to Dynamics
OUTPUT_DIM = 32         # size of the predicted next hidden state
WIDTH = 32              # MLP width

F_IN = INPUT_DIM + 1    # x concatenated with the scalar action
ACTION_COL = INPUT_DIM  # lane of x_aug that carries the action
ONES_COL = F_IN         # lane of x_aug that carries the constant 1.0 (bias fold)
F_AUG = F_IN + 1        # 34: [x(32), action, 1.0]
ONES_HID = WIDTH        # col of h1/h2 that carries the propagated 1.0
HEAD_PAD = 128          # fused head lanes: hs = cols 0:32, reward = col 32
BATCH_BLOCK = 256       # rows per grid step for large batches
_B_BUCKETS = (8, 64, 512, 4096)


# ------------------------------- kernel -------------------------------------
def dynamics_kernel(x_ref, w12_ref, wo_ref, out_ref):
    # x:   (bm, 34)  = [x(32), action, 1.0]   (pad rows are all-zero)
    # w12: (2, 34, 34) stacked [W1|b1 folded], [W2|b2 folded]
    # wo:  (34, 128)  fused hs+reward head, bias folded into row 32
    x = x_ref[...]
    h1 = jnp.maximum(
        jnp.dot(x, w12_ref[0], preferred_element_type=jnp.float32), 0.0)
    h2 = jnp.maximum(
        jnp.dot(h1, w12_ref[1], preferred_element_type=jnp.float32), 0.0)
    out_ref[...] = jnp.dot(h2, wo_ref[...], preferred_element_type=jnp.float32)


# ------------------------- one-time parameter packing ------------------------
def prepare_params(params):
    """Fold biases into weights and pack ONCE; reused by every forward."""
    w1, b1, w2, b2, wh, bh, wr, br = [jnp.asarray(p, jnp.float32) for p in params]

    # layer1: x_aug lanes [x(32), action, 1] -> h1 lanes [h(32), 1, 0]
    w1f = jnp.zeros((F_AUG, F_AUG), jnp.float32)
    w1f = w1f.at[:F_IN, :WIDTH].set(w1)            # (33, 32) real weights
    w1f = w1f.at[ONES_COL, :WIDTH].set(b1)         # bias via the ones lane
    w1f = w1f.at[ONES_COL, ONES_HID].set(1.0)      # propagate 1.0 -> h1 col 32

    # layer2: h1 lanes [h(32), 1, 0] -> h2 lanes [h(32), 1, 0]
    w2f = jnp.zeros((F_AUG, F_AUG), jnp.float32)
    w2f = w2f.at[:WIDTH, :WIDTH].set(w2)
    w2f = w2f.at[ONES_HID, :WIDTH].set(b2)
    w2f = w2f.at[ONES_HID, ONES_HID].set(1.0)
    w12 = jnp.stack([w1f, w2f], axis=0)            # (2, 34, 34)

    # fused head: h2 -> [hs(32), reward, 0...]  (lane-dense 128-wide output)
    wof = jnp.zeros((F_AUG, HEAD_PAD), jnp.float32)
    wof = wof.at[:WIDTH, :OUTPUT_DIM].set(wh)
    wof = wof.at[:WIDTH, OUTPUT_DIM].set(wr[:, 0])
    wof = wof.at[ONES_HID, :OUTPUT_DIM].set(bh)
    wof = wof.at[ONES_HID, OUTPUT_DIM].set(br[0])
    return (w12, wof)


# ------------------------------- pallas_call ---------------------------------
def _run_kernel(x_aug, w12, wof):
    b_pad = x_aug.shape[0]
    bm = min(b_pad, BATCH_BLOCK)
    grid = (b_pad // bm,)
    return pl.pallas_call(
        dynamics_kernel,
        out_shape=jax.ShapeDtypeStruct((b_pad, HEAD_PAD), jnp.float32),
        grid=grid,
        in_specs=[
            pl.BlockSpec((bm, F_AUG), lambda i: (i, 0)),
            pl.BlockSpec((2, F_AUG, F_AUG), lambda i: (0, 0, 0)),   # resident
            pl.BlockSpec((F_AUG, HEAD_PAD), lambda i: (0, 0)),      # resident
        ],
        out_specs=pl.BlockSpec((bm, HEAD_PAD), lambda i: (i, 0)),
        compiler_params=pltpu.CompilerParams(
            dimension_semantics=("parallel",)),
    )(x_aug, w12, wof)


# ------------------------------- wrappers ------------------------------------
def _bucket(b):
    for cap in _B_BUCKETS:
        if b <= cap:
            return cap
    return -(-b // BATCH_BLOCK) * BATCH_BLOCK


@jax.jit
def dynamics_forward_batch(xs, actions, packed_params):
    """Batched: xs (B, INPUT_DIM), actions (B,) -> (hs (B, OUTPUT_DIM), reward (B, 1))."""
    w12, wof = packed_params
    b = xs.shape[0]
    b_pad = _bucket(b)
    x_aug = jnp.zeros((b_pad, F_AUG), jnp.float32)
    x_aug = x_aug.at[:b, :INPUT_DIM].set(xs.astype(jnp.float32))
    x_aug = x_aug.at[:b, ACTION_COL].set(jnp.asarray(actions, jnp.float32))
    x_aug = x_aug.at[:b, ONES_COL].set(1.0)       # bias-fold lane (pad rows stay 0)
    out = _run_kernel(x_aug, w12, wof)
    hs = out[:b, :OUTPUT_DIM]
    reward = out[:b, OUTPUT_DIM:OUTPUT_DIM + 1]
    return hs, reward


@jax.jit
def dynamics_forward(x, action, packed_params):
    """Single state: x (INPUT_DIM,), action scalar -> (hs (OUTPUT_DIM,), reward (1,))."""
    actions = jnp.reshape(jnp.asarray(action, jnp.float32), (1,))
    hs, reward = dynamics_forward_batch(x[None, :], actions, packed_params)
    return hs[0], reward[0]


# ------------------------- deterministic parameter init ----------------------
def init_params(key):
    ks = jax.random.split(key, 8)

    def linear(kw, kb, fan_in, fan_out):
        bound = 1.0 / jnp.sqrt(fan_in)
        w = jax.random.uniform(kw, (fan_in, fan_out), jnp.float32, -bound, bound)
        b = jax.random.uniform(kb, (fan_out,), jnp.float32, -bound, bound)
        return w, b

    w1, b1 = linear(ks[0], ks[1], F_IN, WIDTH)
    w2, b2 = linear(ks[2], ks[3], WIDTH, WIDTH)
    wh, bh = linear(ks[4], ks[5], WIDTH, OUTPUT_DIM)
    wr, br = linear(ks[6], ks[7], WIDTH, 1)
    return (w1, b1, w2, b2, wh, bh, wr, br)


def reference_forward(x, action, params):
    w1, b1, w2, b2, wh, bh, wr, br = params
    x_aug = jnp.concatenate([x, jnp.asarray([action], dtype=jnp.float32)], axis=0)
    h1 = jnp.maximum(x_aug @ w1 + b1, 0.0)
    h2 = jnp.maximum(h1 @ w2 + b2, 0.0)
    return h2 @ wh + bh, h2 @ wr + br


if __name__ == "__main__":
    key = jax.random.PRNGKey(0)
    k_param, k_x, k_xb = jax.random.split(key, 3)
    params = init_params(k_param)
    packed_params = prepare_params(params)          # folded/packed ONCE
    jax.block_until_ready(packed_params)

    # --- single-state forward (matches the PyTorch module signature) ---------
    x = jax.random.normal(k_x, (INPUT_DIM,), dtype=jnp.float32)
    action = 1  # discrete action index, cast to float and concatenated (as in PyTorch)

    hs, reward = dynamics_forward(x, action, packed_params)
    jax.block_until_ready((hs, reward))

    hs_ref, rew_ref = reference_forward(x, action, params)
    assert hs.shape == (OUTPUT_DIM,) and reward.shape == (1,)
    assert jnp.allclose(hs, hs_ref, atol=1e-5, rtol=1e-5)
    assert jnp.allclose(reward, rew_ref, atol=1e-5, rtol=1e-5)

    # --- batched forward (amortizes launch + weight DMA across states) -------
    B = 5
    xs = jax.random.normal(k_xb, (B, INPUT_DIM), dtype=jnp.float32)
    actions = jnp.array([0, 1, 0, 1, 1], dtype=jnp.float32)

    hs_b, rew_b = dynamics_forward_batch(xs, actions, packed_params)
    jax.block_until_ready((hs_b, rew_b))
    assert hs_b.shape == (B, OUTPUT_DIM) and rew_b.shape == (B, 1)
    for i in range(B):
        hri, rri = reference_forward(xs[i], float(actions[i]), params)
        assert jnp.allclose(hs_b[i], hri, atol=1e-5, rtol=1e-5)
        assert jnp.allclose(rew_b[i], rri, atol=1e-5, rtol=1e-5)

    print("KERNEL_OK")
</pallas_src>

<mosaic_0001>
module attributes {stable_mosaic.version = 11 : i64} {
  func.func @dynamics_kernel(%arg0: i32, %arg1: memref<8x34xf32, #tpu.memory_space<vmem>>, %arg2: memref<2x34x34xf32, #tpu.memory_space<vmem>>, %arg3: memref<34x128xf32, #tpu.memory_space<vmem>>, %arg4: memref<8x128xf32, #tpu.memory_space<vmem>>) attributes {dimension_semantics = [#tpu.dimension_semantics<parallel>], iteration_bounds = array<i64: 1>, scalar_prefetch = 0 : i64, scratch_operands = 0 : i64, tpu.core_type = #tpu.core_type<tc>, window_params = [{transform_indices = @transform_0, window_bounds = array<i64: 8, 34>}, {pipeline_mode = #tpu.pipeline_mode<synchronous>, transform_indices = @transform_1, window_bounds = array<i64: 2, 34, 34>}, {pipeline_mode = #tpu.pipeline_mode<synchronous>, transform_indices = @transform_2, window_bounds = array<i64: 34, 128>}, {transform_indices = @transform_3, window_bounds = array<i64: 8, 128>}]} {
    %c0 = arith.constant 0 : index
    %c0_0 = arith.constant 0 : index
    %0 = vector.load %arg1[%c0, %c0_0] : memref<8x34xf32, #tpu.memory_space<vmem>>, vector<8x34xf32>
    %c0_1 = arith.constant 0 : index
    %c0_2 = arith.constant 0 : index
    %c0_3 = arith.constant 0 : index
    %1 = vector.load %arg2[%c0_1, %c0_2, %c0_3] : memref<2x34x34xf32, #tpu.memory_space<vmem>>, vector<1x34x34xf32>
    %2 = vector.shape_cast %1 : vector<1x34x34xf32> to vector<34x34xf32>
    %cst = arith.constant dense<0.000000e+00> : vector<8x34xf32>
    %3 = tpu.matmul %0, %2, %cst {dimension_numbers = #tpu.dot_dimension_numbers<[1], [0], [0], [1], [0, 0, 1, 1], [], []>} : vector<8x34xf32>, vector<34x34xf32>, vector<8x34xf32> -> vector<8x34xf32>
    %cst_4 = arith.constant 0.000000e+00 : f32
    %4 = vector.broadcast %cst_4 : f32 to vector<8x34xf32>
    %5 = arith.maximumf %3, %4 : vector<8x34xf32>
    %c1 = arith.constant 1 : index
    %c0_5 = arith.constant 0 : index
    %c0_6 = arith.constant 0 : index
    %6 = vector.load %arg2[%c1, %c0_5, %c0_6] : memref<2x34x34xf32, #tpu.memory_space<vmem>>, vector<1x34x34xf32>
    %7 = vector.shape_cast %6 : vector<1x34x34xf32> to vector<34x34xf32>
    %cst_7 = arith.constant dense<0.000000e+00> : vector<8x34xf32>
    %8 = tpu.matmul %5, %7, %cst_7 {dimension_numbers = #tpu.dot_dimension_numbers<[1], [0], [0], [1], [0, 0, 1, 1], [], []>} : vector<8x34xf32>, vector<34x34xf32>, vector<8x34xf32> -> vector<8x34xf32>
    %cst_8 = arith.constant 0.000000e+00 : f32
    %9 = vector.broadcast %cst_8 : f32 to vector<8x34xf32>
    %10 = arith.maximumf %8, %9 : vector<8x34xf32>
    %c0_9 = arith.constant 0 : index
    %c0_10 = arith.constant 0 : index
    %11 = vector.load %arg3[%c0_9, %c0_10] : memref<34x128xf32, #tpu.memory_space<vmem>>, vector<34x128xf32>
    %cst_11 = arith.constant dense<0.000000e+00> : vector<8x128xf32>
    %12 = tpu.matmul %10, %11, %cst_11 {dimension_numbers = #tpu.dot_dimension_numbers<[1], [0], [0], [1], [0, 0, 1, 1], [], []>} : vector<8x34xf32>, vector<34x128xf32>, vector<8x128xf32> -> vector<8x128xf32>
    %c0_12 = arith.constant 0 : index
    %c0_13 = arith.constant 0 : index
    %13 = vector.load %arg4[%c0_12, %c0_13] : memref<8x128xf32, #tpu.memory_space<vmem>>, vector<8x128xf32>
    tpu.vector_store %arg4[%c0_12, %c0_13], %12 {strides = array<i32>} : memref<8x128xf32, #tpu.memory_space<vmem>>, vector<8x128xf32>,
    return
  }
  func.func @transform_0(%arg0: i32) -> (i32, i32) {
    %c0_i32 = arith.constant 0 : i32
    %c0_i32_0 = arith.constant 0 : i32
    return %arg0, %c0_i32 : i32, i32
  }
  func.func @transform_1(%arg0: i32) -> (i32, i32, i32) {
    %c0_i32 = arith.constant 0 : i32
    %c0_i32_0 = arith.constant 0 : i32
    %c0_i32_1 = arith.constant 0 : i32
    %c0_i32_2 = arith.constant 0 : i32
    return %c0_i32, %c0_i32_0, %c0_i32_1 : i32, i32, i32
  }
  func.func @transform_2(%arg0: i32) -> (i32, i32) {
    %c0_i32 = arith.constant 0 : i32
    %c0_i32_0 = arith.constant 0 : i32
    %c0_i32_1 = arith.constant 0 : i32
    return %c0_i32, %c0_i32_0 : i32, i32
  }
  func.func @transform_3(%arg0: i32) -> (i32, i32) {
    %c0_i32 = arith.constant 0 : i32
    %c0_i32_0 = arith.constant 0 : i32
    return %arg0, %c0_i32 : i32, i32
  }
}

</mosaic_0001>

<llo_original>
// kernel: dynamics_forward_batch.1
$region0: #{dynamics_forward_batch.1}
  #allocation0 [shape = 'u32[]', space=smem, size = 0x4, offset = 0x4, fixed_abs, tag = 'smem constant byte address 0x4 - core index']
  #allocation1 [shape = 'u32[144,128]{1,0:T(1,128)}', space=vmem, size = 0x12000, scoped, tag = 'internal scratch']
  %s0 = inlined_call_operand.vmem [shape: f32[8,34], index: 0, kind: input, shape index: {}]
  %s1 = inlined_call_operand.vmem [shape: f32[2,34,34], index: 1, kind: input, shape index: {}]
  %s2 = inlined_call_operand.vmem [shape: f32[34,128], index: 2, kind: input, shape index: {}]
  %s3 = inlined_call_operand.vmem [shape: f32[8,128], index: 3, kind: output, shape index: {}]
  %s4 = sld [smem:[#allocation0]]
  $region22: #{dynamics_forward_batch.1} parent=0
    _
  %s6 = ssub.s32 1, %s4
  %s7 = scalar_select 0, %s6, %s4
  // Predicated region
  $region2: #{dynamics_forward_batch.1} parent=0 // pred_check
    _
  $region3: #{dynamics_forward_batch.1} parent=0 // pred_check_branch
    %9 = sbr.rel (0) target = $region5
  $region4: #{dynamics_forward_batch.1} parent=0 // pred_region
    _
  $region5: #{dynamics_forward_batch.1} parent=0 // pred_fallthru
    _
  // Predicated region
  $region6: #{dynamics_forward_batch.1} parent=0 // pred_check
    _
  $region7: #{dynamics_forward_batch.1} parent=0 // pred_check_branch
    %11 = sbr.rel (0) target = $region9
  $region8: #{dynamics_forward_batch.1} parent=0 // pred_region
    _
  $region9: #{dynamics_forward_batch.1} parent=0 // pred_fallthru
    _
  // Predicated region
  $region10: #{dynamics_forward_batch.1} parent=0 // pred_check
    _
  $region11: #{dynamics_forward_batch.1} parent=0 // pred_check_branch
    %13 = sbr.rel (0) target = $region13
  $region12: #{dynamics_forward_batch.1} parent=0 // pred_region
    _
  $region13: #{dynamics_forward_batch.1} parent=0 // pred_fallthru
    _
  %v14 = vld [vmem:[%s0] sm:$0xff]
  %v15 = vld [vmem:[%s1] sm:$0xff]
  %v16 = vld [vmem:[%s1 + $0x8] sm:$0xff]
  %v17 = vld [vmem:[%s1 + $0x10] sm:$0xff]
  %v18 = vld [vmem:[%s1 + $0x18] sm:$0xff]
  %v19 = vld [vmem:[%s1 + $0x20] sm:$0x3]
  %vm20 = vcmask 277504
  %v22 = vsel %vm20, %v14, 0
  %vm24 = vcmask 1041408
  %v26 = vsel %vm24, %v19, 0
  %28 = vmatprep.subr.mxu0 0.0
  %29 = vmatpush1.msra.mxu0 0.0
  %30 = vmatprep.subr.mxu0 0.0
  %31 = vmatpush1.msra.mxu0 0.0
  %32 = vmatprep.subr.mxu0 0.0
  %33 = vmatpush1.msra.mxu0 0.0
  %34 = vmatprep.subr.mxu0 0.0
  %35 = vmatpush1.msra.mxu0 0.0
  %36 = vmatprep.subr.mxu0 0.0
  %37 = vmatpush1.msra.mxu0 0.0
  %38 = vmatprep.subr.mxu0 0.0
  %39 = vmatpush1.msra.mxu0 0.0
  %40 = vmatprep.subr.mxu0 0.0
  %41 = vmatpush1.msra.mxu0 0.0
  %42 = vmatprep.subr.mxu0 0.0
  %43 = vmatpush1.msra.mxu0 0.0
  %44 = vmatprep.subr.mxu0 0.0
  %45 = vmatpush1.msra.mxu0 0.0
  %46 = vmatprep.subr.mxu0 0.0
  %47 = vmatpush1.msra.mxu0 0.0
  %48 = vmatprep.subr.mxu0 0.0
  %49 = vmatpush1.msra.mxu0 0.0
  %50 = vmatprep.subr.mxu0 0.0
  %51 = vmatpush1.msra.mxu0 %v26
  %52 = vmatprep.subr.mxu0 0.0
  %53 = vmatpush1.msra.mxu0 %v18
  %54 = vmatprep.subr.mxu0 0.0
  %55 = vmatpush1.msra.mxu0 %v17
  %56 = vmatprep.subr.mxu0 0.0
  %57 = vmatpush1.msra.mxu0 %v16
  %58 = vmatprep.subr.mxu0 0.0
  %59 = vmatpush1.msra.mxu0 %v15
  %60 = vmatprep.subr.mxu0 0.0
  %61 = vmatpush2.msra.mxu0 0.0
  %62 = vmatprep.subr.mxu0 0.0
  %63 = vmatpush2.msra.mxu0 0.0
  %64 = vmatprep.subr.mxu0 0.0
  %65 = vmatpush2.msra.mxu0 0.0
  %66 = vmatprep.subr.mxu0 0.0
  %67 = vmatpush2.msra.mxu0 0.0
  %68 = vmatprep.subr.mxu0 0.0
  %69 = vmatpush2.msra.mxu0 0.0
  %70 = vmatprep.subr.mxu0 0.0
  %71 = vmatpush2.msra.mxu0 0.0
  %72 = vmatprep.subr.mxu0 0.0
  %73 = vmatpush2.msra.mxu0 0.0
  %74 = vmatprep.subr.mxu0 0.0
  %75 = vmatpush2.msra.mxu0 0.0
  %76 = vmatprep.subr.mxu0 0.0
  %77 = vmatpush2.msra.mxu0 0.0
  %78 = vmatprep.subr.mxu0 0.0
  %79 = vmatpush2.msra.mxu0 0.0
  %80 = vmatprep.subr.mxu0 0.0
  %81 = vmatpush2.msra.mxu0 0.0
  %82 = vmatprep.subr.mxu0 0.0
  %83 = vmatpush2.msra.mxu0 0.0
  %84 = vmatprep.subr.mxu0 0.0
  %85 = vmatpush2.msra.mxu0 0.0
  %86 = vmatprep.subr.mxu0 0.0
  %87 = vmatpush2.msra.mxu0 0.0
  %88 = vmatprep.subr.mxu0 0.0
  %89 = vmatpush2.msra.mxu0 0.0
  %90 = vmatprep.subr.mxu0 0.0
  %91 = vmatpush2.msra.mxu0 0.0
  %92 = vmatprep.mubr.f32.mxu0 0.0
  %93 = vmatmul.mubr.f32.gmra.mxu0 %v22
  %v94 = vpop.f32.mrf.mxu0
  %v95 = vadd.f32 0.0, %v94
  %v96 = vpop.f32.mrf.mxu0
  %97 = vdwg.mxu0
  %v98 = vmax.f32 %v95, 0.0
  %s99 = scalar_lea.vmem %s1, 40
  %v100 = vld [vmem:[%s99] sm:$0xff]
  %v101 = vld [vmem:[%s99 + $0x8] sm:$0xff]
  %v102 = vld [vmem:[%s99 + $0x10] sm:$0xff]
  %v103 = vld [vmem:[%s99 + $0x18] sm:$0xff]
  %v104 = vld [vmem:[%s99 + $0x20] sm:$0x3]
  %v106 = vsel %vm20, %v98, 0
  %v109 = vsel %vm24, %v104, 0
  %111 = vmatprep.subr.mxu0 0.0
  %112 = vmatpush1.msra.mxu0 0.0
  %113 = vmatprep.subr.mxu0 0.0
  %114 = vmatpush1.msra.mxu0 0.0
  %115 = vmatprep.subr.mxu0 0.0
  %116 = vmatpush1.msra.mxu0 0.0
  %117 = vmatprep.subr.mxu0 0.0
  %118 = vmatpush1.msra.mxu0 0.0
  %119 = vmatprep.subr.mxu0 0.0
  %120 = vmatpush1.msra.mxu0 0.0
  %121 = vmatprep.subr.mxu0 0.0
  %122 = vmatpush1.msra.mxu0 0.0
  %123 = vmatprep.subr.mxu0 0.0
  %124 = vmatpush1.msra.mxu0 0.0
  %125 = vmatprep.subr.mxu0 0.0
  %126 = vmatpush1.msra.mxu0 0.0
  %127 = vmatprep.subr.mxu0 0.0
  %128 = vmatpush1.msra.mxu0 0.0
  %129 = vmatprep.subr.mxu0 0.0
  %130 = vmatpush1.msra.mxu0 0.0
  %131 = vmatprep.subr.mxu0 0.0
  %132 = vmatpush1.msra.mxu0 0.0
  %133 = vmatprep.subr.mxu0 0.0
  %134 = vmatpush1.msra.mxu0 %v109
  %135 = vmatprep.subr.mxu0 0.0
  %136 = vmatpush1.msra.mxu0 %v103
  %137 = vmatprep.subr.mxu0 0.0
  %138 = vmatpush1.msra.mxu0 %v102
  %139 = vmatprep.subr.mxu0 0.0
  %140 = vmatpush1.msra.mxu0 %v101
  %141 = vmatprep.subr.mxu0 0.0
  %142 = vmatpush1.msra.mxu0 %v100
  %143 = vmatprep.subr.mxu0 0.0
  %144 = vmatpush2.msra.mxu0 0.0
  %145 = vmatprep.subr.mxu0 0.0
  %146 = vmatpush2.msra.mxu0 0.0
  %147 = vmatprep.subr.mxu0 0.0
  %148 = vmatpush2.msra.mxu0 0.0
  %149 = vmatprep.subr.mxu0 0.0
  %150 = vmatpush2.msra.mxu0 0.0
  %151 = vmatprep.subr.mxu0 0.0
  %152 = vmatpush2.msra.mxu0 0.0
  %153 = vmatprep.subr.mxu0 0.0
  %154 = vmatpush2.msra.mxu0 0.0
  %155 = vmatprep.subr.mxu0 0.0
  %156 = vmatpush2.msra.mxu0 0.0
  %157 = vmatprep.subr.mxu0 0.0
  %158 = vmatpush2.msra.mxu0 0.0
  %159 = vmatprep.subr.mxu0 0.0
  %160 = vmatpush2.msra.mxu0 0.0
  %161 = vmatprep.subr.mxu0 0.0
  %162 = vmatpush2.msra.mxu0 0.0
  %163 = vmatprep.subr.mxu0 0.0
  %164 = vmatpush2.msra.mxu0 0.0
  %165 = vmatprep.subr.mxu0 0.0
  %166 = vmatpush2.msra.mxu0 0.0
  %167 = vmatprep.subr.mxu0 0.0
  %168 = vmatpush2.msra.mxu0 0.0
  %169 = vmatprep.subr.mxu0 0.0
  %170 = vmatpush2.msra.mxu0 0.0
  %171 = vmatprep.subr.mxu0 0.0
  %172 = vmatpush2.msra.mxu0 0.0
  %173 = vmatprep.subr.mxu0 0.0
  %174 = vmatpush2.msra.mxu0 0.0
  %175 = vmatprep.mubr.f32.mxu0 0.0
  %176 = vmatmul.mubr.f32.gmra.mxu0 %v106
  %v177 = vpop.f32.mrf.mxu0
  %v178 = vadd.f32 0.0, %v177
  %v179 = vpop.f32.mrf.mxu0
  %180 = vdwg.mxu0
  %v181 = vmax.f32 %v178, 0.0
  %v182 = vld [vmem:[%s2] sm:$0xff]
  %v183 = vld [vmem:[%s2 + $0x8] sm:$0xff]
  %v184 = vld [vmem:[%s2 + $0x10] sm:$0xff]
  %v185 = vld [vmem:[%s2 + $0x18] sm:$0xff]
  %v186 = vld [vmem:[%s2 + $0x20] sm:$0x3]
  %v188 = vsel %vm20, %v181, 0
  %v191 = vsel %vm24, %v186, 0
  %193 = vmatprep.subr.mxu0 0.0
  %194 = vmatpush1.msra.mxu0 0.0
  %195 = vmatprep.subr.mxu0 0.0
  %196 = vmatpush1.msra.mxu0 0.0
  %197 = vmatprep.subr.mxu0 0.0
  %198 = vmatpush1.msra.mxu0 0.0
  %199 = vmatprep.subr.mxu0 0.0
  %200 = vmatpush1.msra.mxu0 0.0
  %201 = vmatprep.subr.mxu0 0.0
  %202 = vmatpush1.msra.mxu0 0.0
  %203 = vmatprep.subr.mxu0 0.0
  %204 = vmatpush1.msra.mxu0 0.0
  %205 = vmatprep.subr.mxu0 0.0
  %206 = vmatpush1.msra.mxu0 0.0
  %207 = vmatprep.subr.mxu0 0.0
  %208 = vmatpush1.msra.mxu0 0.0
  %209 = vmatprep.subr.mxu0 0.0
  %210 = vmatpush1.msra.mxu0 0.0
  %211 = vmatprep.subr.mxu0 0.0
  %212 = vmatpush1.msra.mxu0 0.0
  %213 = vmatprep.subr.mxu0 0.0
  %214 = vmatpush1.msra.mxu0 0.0
  %215 = vmatprep.subr.mxu0 0.0
  %216 = vmatpush1.msra.mxu0 %v191
  %217 = vmatprep.subr.mxu0 0.0
  %218 = vmatpush1.msra.mxu0 %v185
  %219 = vmatprep.subr.mxu0 0.0
  %220 = vmatpush1.msra.mxu0 %v184
  %221 = vmatprep.subr.mxu0 0.0
  %222 = vmatpush1.msra.mxu0 %v183
  %223 = vmatprep.subr.mxu0 0.0
  %224 = vmatpush1.msra.mxu0 %v182
  %225 = vmatprep.subr.mxu0 0.0
  %226 = vmatpush2.msra.mxu0 0.0
  %227 = vmatprep.subr.mxu0 0.0
  %228 = vmatpush2.msra.mxu0 0.0
  %229 = vmatprep.subr.mxu0 0.0
  %230 = vmatpush2.msra.mxu0 0.0
  %231 = vmatprep.subr.mxu0 0.0
  %232 = vmatpush2.msra.mxu0 0.0
  %233 = vmatprep.subr.mxu0 0.0
  %234 = vmatpush2.msra.mxu0 0.0
  %235 = vmatprep.subr.mxu0 0.0
  %236 = vmatpush2.msra.mxu0 0.0
  %237 = vmatprep.subr.mxu0 0.0
  %238 = vmatpush2.msra.mxu0 0.0
  %239 = vmatprep.subr.mxu0 0.0
  %240 = vmatpush2.msra.mxu0 0.0
  %241 = vmatprep.subr.mxu0 0.0
  %242 = vmatpush2.msra.mxu0 0.0
  %243 = vmatprep.subr.mxu0 0.0
  %244 = vmatpush2.msra.mxu0 0.0
  %245 = vmatprep.subr.mxu0 0.0
  %246 = vmatpush2.msra.mxu0 0.0
  %247 = vmatprep.subr.mxu0 0.0
  %248 = vmatpush2.msra.mxu0 0.0
  %249 = vmatprep.subr.mxu0 0.0
  %250 = vmatpush2.msra.mxu0 0.0
  %251 = vmatprep.subr.mxu0 0.0
  %252 = vmatpush2.msra.mxu0 0.0
  %253 = vmatprep.subr.mxu0 0.0
  %254 = vmatpush2.msra.mxu0 0.0
  %255 = vmatprep.subr.mxu0 0.0
  %256 = vmatpush2.msra.mxu0 0.0
  %257 = vmatprep.mubr.f32.mxu0 0.0
  %258 = vmatmul.mubr.f32.gmra.mxu0 %v188
  %v259 = vpop.f32.mrf.mxu0
  %v260 = vadd.f32 0.0, %v259
  %v261 = vpop.f32.mrf.mxu0
  %262 = vdwg.mxu0
  %263 = vst [vmem:[%s3] sm:$0xff] %v260
  // Predicated region
  $region14: #{dynamics_forward_batch.1} parent=0 // pred_check
    _
  $region15: #{dynamics_forward_batch.1} parent=0 // pred_check_branch
    %265 = sbr.rel (0) target = $region17
  $region16: #{dynamics_forward_batch.1} parent=0 // pred_region
    _
  $region17: #{dynamics_forward_batch.1} parent=0 // pred_fallthru
    _
  // Predicated region
  $region18: #{dynamics_forward_batch.1} parent=0 // pred_check
    _
  $region19: #{dynamics_forward_batch.1} parent=0 // pred_check_branch
    %267 = sbr.rel (0) target = $region21
  $region20: #{dynamics_forward_batch.1} parent=0 // pred_region
    _
  $region21: #{dynamics_forward_batch.1} parent=0 // pred_fallthru
    _

</llo_original>
